<compile_context>
chip_gen: v7x
topology: tpu7x:2x2x1
jax: 0.10.0
libtpu: 0.0.40
codegen_flags: <defaults>
</compile_context>

<pallas_src>
import functools
import warnings

import jax
import jax.numpy as jnp
from jax import lax
from jax.experimental import pallas as pl
from jax.experimental.pallas import tpu as pltpu

EPS = 1e-5  # PyTorch InstanceNorm2d default eps (affine=False -> no gamma/beta)


@functools.cache
def _roll_matches_numpy(backend: str) -> bool:
    """True iff pltpu.roll(x, s, 0) == np.roll(x, s, 0) on `backend`."""
    del backend  # only a cache key (don't reuse a stale probe across backends)

    def probe(x_ref, o_ref):
        o_ref[...] = pltpu.roll(x_ref[...], 1, 0)

    x = jnp.arange(8 * 128, dtype=jnp.float32).reshape(8, 128)
    y = pl.pallas_call(probe, out_shape=jax.ShapeDtypeStruct((8, 128), jnp.float32))(x)
    return bool(y[1, 0] == x[0, 0])


def _vmem_limit_bytes(HW, W, C, x_dtype, out_dtype, compute_dtype):
    """Explicit VMEM footprint estimate for this call (no blanket heuristic)."""
    xb = jnp.dtype(x_dtype).itemsize
    ob = jnp.dtype(out_dtype).itemsize
    cb = jnp.dtype(compute_dtype).itemsize
    io = 2 * HW * C * (xb + ob)            # double-buffered input/output blocks
    wts = 2 * 2 * 9 * C * C * cb           # w1, w2 (pipeline double-buffers them)
    pad = (HW + 2 * W) * 3 * C * cb        # row-padded tap scratch
    temps = HW * C * (6 * cb + 12)         # column taps + f32 acc / h / residual
    need = io + wts + pad + temps + (4 << 20)   # headroom for compiler scratch
    try:
        cap = int(pltpu.get_tpu_info().vmem_capacity_bytes)
    except Exception:  # interpret mode / unknown device
        cap = 64 << 20
    limit = int(min(max(need, 32 << 20), cap - (4 << 20)))
    assert need <= limit, (
        f"ResnetBlock working set ~{need >> 20} MiB exceeds VMEM (~{cap >> 20} MiB); "
        "tile the spatial dimension (see TODO) or lower the resolution.")
    return limit


def _resnet_block_kernel(x_ref, w1_ref, w2_ref, out_ref, pad_ref, *,
                         H, W, compute_dtype, roll_like_numpy):
    # x_ref block: (1, H*W, C) in the input dtype; w*_ref: (3, 3C, C) compute_dtype;
    # pad_ref: (H*W + 2W, 3C) compute_dtype scratch (row-padded tap slab).
    HW = H * W
    C = out_ref.shape[-1]
    f32 = jnp.float32
    x_res = x_ref[0]                       # residual kept in the input dtype
    inv_hw = 1.0 / HW

    # Column-boundary masks for the reflected kx taps (flat index k = i*W + j).
    j_idx = lax.broadcasted_iota(jnp.int32, (HW, 1), 0) % W
    col_first = j_idx == 0                 # j == 0
    col_last = j_idx == (W - 1)            # j == W-1

    def shift1(a, d):
        # np.roll(a, d, axis=0) semantics for d in {+1, -1}, regardless of the
        # hardware rotate direction on this backend.
        n = a.shape[0]
        s = (d % n) if roll_like_numpy else ((-d) % n)
        return pltpu.roll(a, s, 0)

    def conv3x3(a, w_ref):
        # Reflection-padded 3x3 conv of a (HW, C) activation; f32 accumulation.
        # Bias omitted on purpose: InstanceNorm2d(affine=False) subtracts the
        # per-channel mean, so a per-channel bias cancels exactly.
        ac = a.astype(compute_dtype)           # build all taps in compute dtype
        rp1 = shift1(ac, 1)                    # flat k-1 -> x[i, j-1]  (valid j > 0)
        rm1 = shift1(ac, -1)                   # flat k+1 -> x[i, j+1]  (valid j < W-1)
        left = jnp.where(col_first, rm1, rp1)  # x[i, reflect(j-1)]
        right = jnp.where(col_last, rp1, rm1)  # x[i, reflect(j+1)]

        # Row-padded tap slab: rows [W, W+HW) hold [left | center | right]; the
        # W-row top/bottom pads hold the reflected image rows 1 and H-2, so the
        # ky = 0/1/2 matmul operands are static sublane slices at 0 / W / 2W
        # (no +/-W rolls, no full-slab row selects).
        pad_ref[W:W + HW, 0:C] = left
        pad_ref[W:W + HW, C:2 * C] = ac
        pad_ref[W:W + HW, 2 * C:3 * C] = right
        pad_ref[0:W, :] = pad_ref[2 * W:3 * W, :]               # reflect(i=-1) -> 1
        pad_ref[HW + W:HW + 2 * W, :] = pad_ref[HW - W:HW, :]   # reflect(i=H)  -> H-2

        # kx is folded into the 3C contraction; one matmul per ky, each operand
        # read right before its dot so at most one (HW, 3C) slab is live.
        acc = jnp.dot(pad_ref[0:HW, :], w_ref[0], preferred_element_type=f32)
        acc = acc + jnp.dot(pad_ref[W:W + HW, :], w_ref[1], preferred_element_type=f32)
        acc = acc + jnp.dot(pad_ref[2 * W:2 * W + HW, :], w_ref[2],
                            preferred_element_type=f32)
        return acc                              # (HW, C) f32

    def inst_norm(y):
        # Single-pass biased statistics (matches PyTorch InstanceNorm2d), f32.
        s1 = jnp.sum(y, axis=0, keepdims=True)
        s2 = jnp.sum(y * y, axis=0, keepdims=True)
        mean = s1 * inv_hw
        var = jnp.maximum(s2 * inv_hw - mean * mean, 0.0)
        return (y - mean) * lax.rsqrt(var + EPS)

    h = jnp.maximum(inst_norm(conv3x3(x_res, w1_ref)), 0.0)    # conv -> IN -> ReLU
    h = inst_norm(conv3x3(h, w2_ref))                          # conv -> IN
    out_ref[0] = (x_res.astype(f32) + h).astype(out_ref.dtype)


def resnet_block_nhwc(x_nhwc, w1, b1, w2, b2, *, compute_dtype=jnp.bfloat16):
    """Fused ResnetBlock forward on NHWC activations (no layout round trips).

    x_nhwc: (N, H, W, C); w1, w2: (3, 3, C, C) = (kH, kW, Cin, Cout); b1, b2: (C,)
    are accepted for API parity but unused (cancelled exactly by InstanceNorm).
    Returns (N, H, W, C) in x_nhwc.dtype.
    """
    del b1, b2
    N, H, W, C = x_nhwc.shape
    assert H >= 2 and W >= 2, "ReflectionPad2d(1) needs H, W >= 2"
    if C % 128 != 0 or W % 8 != 0:
        warnings.warn("resnet_block: C % 128 != 0 or W % 8 != 0 compiles to "
                      "masked/padded (correct but slower) TPU layouts.", stacklevel=2)
    HW = H * W

    x = x_nhwc.reshape(N, HW, C)                           # channels on the lane axis
    w1c = w1.reshape(3, 3 * C, C).astype(compute_dtype)    # fold kx into the contraction
    w2c = w2.reshape(3, 3 * C, C).astype(compute_dtype)

    kernel = functools.partial(
        _resnet_block_kernel, H=H, W=W, compute_dtype=compute_dtype,
        roll_like_numpy=_roll_matches_numpy(jax.default_backend()))

    # TODO(synk): for large images (e.g. C=256, H=W>=96) tile the spatial dim with
    # an inner row-block pipeline + two-pass instance norm to bound the working
    # set on v7x's 64 MiB VMEM; the full-image-per-step form below fits the
    # production generator dims (C<=256, H=W<=64).
    # TODO(synk): for N == 1 on v7x (2 TensorCores) add a second "parallel" grid
    # axis splitting H (two-pass instance norm) so both cores get work.
    out = pl.pallas_call(
        kernel,
        out_shape=jax.ShapeDtypeStruct((N, HW, C), x_nhwc.dtype),
        grid_spec=pltpu.PrefetchScalarGridSpec(
            num_scalar_prefetch=0,
            grid=(N,),
            in_specs=[
                pl.BlockSpec((1, HW, C), lambda n: (n, 0, 0)),
                # Constant block index -> weights stay resident in VMEM.
                # TODO(synk): pipeline_mode=pl.Buffered(1) would also drop their
                # unused second pipeline buffer (~1-2 MiB at C=256) once
                # single-buffering of constant-index inputs is fully supported.
                pl.BlockSpec((3, 3 * C, C), lambda n: (0, 0, 0)),
                pl.BlockSpec((3, 3 * C, C), lambda n: (0, 0, 0)),
            ],
            out_specs=pl.BlockSpec((1, HW, C), lambda n: (n, 0, 0)),
            scratch_shapes=[pltpu.VMEM((HW + 2 * W, 3 * C), compute_dtype)],
        ),
        compiler_params=pltpu.CompilerParams(
            dimension_semantics=("parallel",),
            vmem_limit_bytes=_vmem_limit_bytes(HW, W, C, x_nhwc.dtype,
                                               x_nhwc.dtype, compute_dtype),
        ),
    )(x, w1c, w2c)
    return out.reshape(N, H, W, C)


def resnet_block(x_nchw, w1, b1, w2, b2, *, compute_dtype=jnp.bfloat16):
    """NCHW wrapper matching the PyTorch module.

    Models that already carry NHWC activations should call resnet_block_nhwc
    directly and skip these two transposes (each is a full HBM round trip).
    """
    x_nhwc = jnp.transpose(x_nchw, (0, 2, 3, 1))
    out = resnet_block_nhwc(x_nhwc, w1, b1, w2, b2, compute_dtype=compute_dtype)
    return jnp.transpose(out, (0, 3, 1, 2))


def _reference(x_nchw, w1, b1, w2, b2):
    # Pure-JAX f32 reference of the PyTorch module (with biases; they cancel).
    def conv(a, w, b):
        ap = jnp.pad(a, ((0, 0), (0, 0), (1, 1), (1, 1)), mode="reflect")
        w_oihw = jnp.transpose(w, (3, 2, 0, 1))
        y = lax.conv_general_dilated(ap, w_oihw, (1, 1), "VALID",
                                     dimension_numbers=("NCHW", "OIHW", "NCHW"),
                                     precision=lax.Precision.HIGHEST)
        return y + b.reshape(1, -1, 1, 1)

    def inorm(y):
        m = jnp.mean(y, axis=(2, 3), keepdims=True)
        v = jnp.mean((y - m) ** 2, axis=(2, 3), keepdims=True)
        return (y - m) / jnp.sqrt(v + EPS)

    h = jax.nn.relu(inorm(conv(x_nchw, w1, b1)))
    h = inorm(conv(h, w2, b2))
    return x_nchw + h


if __name__ == "__main__":
    key = jax.random.PRNGKey(0)
    # ResnetBlock is used at generator widths like dim = 128/256; keep the demo
    # small but lane-dense (C a multiple of 128, W a multiple of 8).
    N, C, H, W = 2, 128, 16, 16
    kx, k1, kb1, k2, kb2 = jax.random.split(key, 5)

    x = jax.random.normal(kx, (N, C, H, W), jnp.float32)
    scale = 1.0 / (3.0 * 3.0 * C) ** 0.5
    w1 = jax.random.normal(k1, (3, 3, C, C), jnp.float32) * scale   # (kH, kW, Cin, Cout)
    b1 = jax.random.normal(kb1, (C,), jnp.float32) * scale
    w2 = jax.random.normal(k2, (3, 3, C, C), jnp.float32) * scale
    b2 = jax.random.normal(kb2, (C,), jnp.float32) * scale

    ref = _reference(x, w1, b1, w2, b2)

    # Structural correctness check: f32 MXU path against the f32 reference.
    out_f32 = resnet_block(x, w1, b1, w2, b2, compute_dtype=jnp.float32)
    jax.block_until_ready(out_f32)
    err_f32 = float(jnp.max(jnp.abs(out_f32 - ref)))
    assert jnp.allclose(out_f32, ref, atol=1e-3, rtol=1e-3), f"f32 max_err={err_f32}"

    # Default performance path: bf16 taps/MXU operands, f32 accumulation/stats.
    # (Single-pass E[x^2]-E[x]^2 stats + bf16 taps -> looser tolerance here.)
    out_bf16 = resnet_block(x, w1, b1, w2, b2)
    jax.block_until_ready(out_bf16)
    err_bf16 = float(jnp.max(jnp.abs(out_bf16 - ref)))
    assert jnp.allclose(out_bf16, ref, atol=1e-1, rtol=5e-2), f"bf16 max_err={err_bf16}"

    print("KERNEL_OK")
</pallas_src>

<mosaic_0001>
module attributes {stable_mosaic.version = 11 : i64} {
  func.func @probe(%arg0: memref<8x128xf32, #tpu.memory_space<vmem>>, %arg1: memref<8x128xf32, #tpu.memory_space<vmem>>) attributes {dimension_semantics = [], scalar_prefetch = 0 : i64, scratch_operands = 0 : i64, tpu.core_type = #tpu.core_type<tc>} {
    %c0 = arith.constant 0 : index
    %c0_0 = arith.constant 0 : index
    %0 = vector.load %arg0[%c0, %c0_0] : memref<8x128xf32, #tpu.memory_space<vmem>>, vector<8x128xf32>
    %c1_i32 = arith.constant 1 : i32
    %1 = tpu.dynamic_rotate %0 by %c1_i32 dim 0 : vector<8x128xf32>, i32 -> vector<8x128xf32>
    %c0_1 = arith.constant 0 : index
    %c0_2 = arith.constant 0 : index
    %2 = vector.load %arg1[%c0_1, %c0_2] : memref<8x128xf32, #tpu.memory_space<vmem>>, vector<8x128xf32>
    tpu.vector_store %arg1[%c0_1, %c0_2], %1 {strides = array<i32>} : memref<8x128xf32, #tpu.memory_space<vmem>>, vector<8x128xf32>,
    return
  }
}

</mosaic_0001>

<llo_original>
// kernel: tpu_custom_call.1
$region0: #{tpu_custom_call.1}
  #allocation0 [shape = 'u32[]', space=smem, size = 0x4, offset = 0x4, fixed_abs, tag = 'smem constant byte address 0x4 - core index']
  #allocation1 [shape = 'u32[144,128]{1,0:T(1,128)}', space=vmem, size = 0x12000, scoped, tag = 'internal scratch']
  %s0 = inlined_call_operand.hbm [shape: f32[8,128], index: 0, kind: input, shape index: {}]
  %s1 = inlined_call_operand.hbm [shape: f32[8,128], index: 1, kind: output, shape index: {}]
  %s2 = sld [smem:[#allocation0]]
  $region18: #{tpu_custom_call.1} parent=0
    _
  %s4 = ssub.s32 1, %s2
  %s5 = scalar_select 0, %s4, %s2
  $region1: #{tpu_custom_call.1} parent=0
    #allocation2 [shape = 'u8[4096]{0}', space=vmem, size = 0x1000, scoped, tag = 'input window, operand 0, single buffered']
    #allocation3 [shape = 's32[1]{0}', space=sflag, size = 0x4, scoped, tag = 'scoped memory for tpu_custom_call.1']
    #allocation4 [shape = 's32[1]{0}', space=sflag, size = 0x4, scoped, tag = 'scoped memory for tpu_custom_call.1']
    #allocation5 [shape = 'u8[4096]{0}', space=vmem, size = 0x1000, scoped, tag = 'output window, operand 0, single buffered']
    %6 = vsyncpa [#allocation3], 0
    %7 = vsyncpa [#allocation4], 0
    // Predicated region
    $region2: #{tpu_custom_call.1} parent=1 // pred_check
      _
    $region3: #{tpu_custom_call.1} parent=1 // pred_check_branch
      %9 = sbr.rel (0) target = $region5
    $region4: #{tpu_custom_call.1} parent=1 // pred_region
      %s11 = ssub.s32 128, 128
      %12 = vsyncadd [#allocation3], %s11
      %s14 = sshll.u32 [#allocation2], 4
      %s15 = int_to_ptr.vmem [resolvable:$true] %s14
      %17 = dma.hbm_to_vmem [thread:$0]  %s0, 128, %s15, [#allocation3]
    $region5: #{tpu_custom_call.1} parent=1 // pred_fallthru
      _
    // Predicated region
    $region6: #{tpu_custom_call.1} parent=1 // pred_check
      _
    $region7: #{tpu_custom_call.1} parent=1 // pred_check_branch
      %19 = sbr.rel (0) target = $region9
    $region8: #{tpu_custom_call.1} parent=1 // pred_region
      %20 = dma.done [#allocation3], 128
    $region9: #{tpu_custom_call.1} parent=1 // pred_fallthru
      _
    %v21 = vld [vmem:[#allocation2] sm:$0xff]
    %v22 = vrot.slane %v21, 7
    %23 = vst [vmem:[#allocation5] sm:$0xff] %v22
    // Predicated region
    $region10: #{tpu_custom_call.1} parent=1 // pred_check
      _
    $region11: #{tpu_custom_call.1} parent=1 // pred_check_branch
      %25 = sbr.rel (0) target = $region13
    $region12: #{tpu_custom_call.1} parent=1 // pred_region
      %s27 = ssub.s32 128, 128
      %28 = vsyncadd [#allocation4], %s27
      %s30 = sshll.u32 [#allocation5], 4
      %s31 = int_to_ptr.vmem [resolvable:$true] %s30
      %33 = dma.vmem_to_hbm [thread:$0]  %s31, 128, %s1, [#allocation4]
    $region13: #{tpu_custom_call.1} parent=1 // pred_fallthru
      _
    // Predicated region
    $region14: #{tpu_custom_call.1} parent=1 // pred_check
      _
    $region15: #{tpu_custom_call.1} parent=1 // pred_check_branch
      %35 = sbr.rel (0) target = $region17
    $region16: #{tpu_custom_call.1} parent=1 // pred_region
      %36 = dma.done [#allocation4], 128
    $region17: #{tpu_custom_call.1} parent=1 // pred_fallthru
      _
    %37 = vsyncpa [#allocation3], 1
    %38 = vsyncpa [#allocation4], 1

</llo_original>
